<compile_context>
chip_gen: v5e
topology: v5e:2x2
jax: 0.10.0
libtpu: 0.0.40
codegen_flags: <defaults>
</compile_context>

<pallas_src>
import numpy as np
import jax
import jax.numpy as jnp
from jax.experimental import pallas as pl
from jax.experimental.pallas import tpu as pltpu


# ----------------------------------------------------------------------------
# Kernel
# ----------------------------------------------------------------------------
def _make_dcn_kernel(num_cross_layers, mlp_dims):
    """Fused Share-DCN forward for one batch tile.

    Ref order:
      ex_ref   : (TB, D0)                embeddings (compute dtype, f32 or bf16)
      pd0_ref  : (4L+2, D0)    f32       [cw_m | cb_m | cw_c | cb_c | lwx_m | lwx_c]
      pht_ref  : (2*H_last, 2) f32       head-h weights, col0=[lwh_m;0], col1=[0;lwh_c]
      w_refs   : n_mlp fused MLP weights (layer0: (D0, 2H1); later: block-diag)
      b_all_ref: (n_mlp+1, 2*Hmax) f32   folded BN biases; last row = [lb_m, lb_c, 0..]
      out_ref  : (TB, 2)       f32       [p_m | p_c]
    """
    L = num_cross_layers
    mlp_dims = tuple(mlp_dims)
    n_mlp = len(mlp_dims)
    assert n_mlp >= 1

    def kernel(ex_ref, pd0_ref, pht_ref, *rest):
        w_refs = rest[:n_mlp]
        b_all_ref = rest[n_mlp]
        out_ref = rest[n_mlp + 1]

        ex = ex_ref[...]                          # (TB, D0) compute dtype
        ex32 = ex.astype(jnp.float32)             # cross network stays f32 on VPU
        pd0 = pd0_ref[...]                        # (4L+2, D0) f32
        b_all = b_all_ref[...]                    # (n_mlp+1, 2*Hmax) f32

        # ---- CrossNetwork for both branches (VPU + XLU lane reduce) ----
        def cross(off):
            x = ex32
            for i in range(L):
                cw_i = pd0[off + i: off + i + 1, :]              # (1, D0)
                cb_i = pd0[off + L + i: off + L + i + 1, :]      # (1, D0)
                xw = jnp.sum(x * cw_i, axis=-1, keepdims=True)   # (TB, 1)
                x = ex32 * xw + cb_i + x
            return x

        x_m = cross(0)           # branch m
        x_c = cross(2 * L)       # branch c

        # ---- Fused dual-branch MLP: one wide matmul per layer ----
        # Layer-0 lhs is compute dtype (bf16-capable MXU); activations stay f32.
        h = ex
        a = None
        for j in range(n_mlp):
            dout = 2 * mlp_dims[j]
            a = jnp.dot(h, w_refs[j][...], preferred_element_type=jnp.float32)
            a = jnp.maximum(a + b_all[j: j + 1, :dout], 0.0)     # folded BN + ReLU
            h = a                                                # f32 between layers
        # a: (TB, 2*H_last) f32 = [h_m | h_c]

        # ---- Heads ----
        # h-part: one underfilled MXU matmul producing both heads at once.
        hh = jnp.dot(a, pht_ref[...], preferred_element_type=jnp.float32)  # (TB, 2)
        # x-part: cheap VPU/XLU lane reductions over D0.
        lwx_m = pd0[4 * L: 4 * L + 1, :]
        lwx_c = pd0[4 * L + 1: 4 * L + 2, :]
        lb_m = b_all[n_mlp: n_mlp + 1, 0:1]
        lb_c = b_all[n_mlp: n_mlp + 1, 1:2]
        px_m = jnp.sum(x_m * lwx_m, axis=-1, keepdims=True)      # (TB, 1)
        px_c = jnp.sum(x_c * lwx_c, axis=-1, keepdims=True)      # (TB, 1)

        # Direct column stores (no lane-repack concat).
        out_ref[:, 0:1] = (px_m + hh[:, 0:1] + lb_m).astype(out_ref.dtype)
        out_ref[:, 1:2] = (px_c + hh[:, 1:2] + lb_c).astype(out_ref.dtype)

    return kernel


# ----------------------------------------------------------------------------
# Parameter init (synthetic, matching the PyTorch module's shapes)
# ----------------------------------------------------------------------------
def init_params(key, field_dims, embed_dim, num_layers, mlp_dims):
    D0 = len(field_dims) * embed_dim
    keys = iter(jax.random.split(key, 64))
    eps = 1e-5  # BatchNorm1d default eps

    params = {
        "embed_table": 0.05 * jax.random.normal(
            next(keys), (sum(field_dims), embed_dim), jnp.float32)
    }

    def make_branch():
        b = {}
        b["cw"] = 0.1 * jax.random.normal(next(keys), (num_layers, D0), jnp.float32)
        b["cb"] = 0.1 * jax.random.normal(next(keys), (num_layers, D0), jnp.float32)
        dims = [D0] + list(mlp_dims)
        b["mlp"] = []
        for i in range(len(mlp_dims)):
            w = jax.random.normal(next(keys), (dims[i], dims[i + 1]),
                                  jnp.float32) / np.sqrt(dims[i])
            bias = 0.01 * jax.random.normal(next(keys), (1, dims[i + 1]), jnp.float32)
            # eval-mode BatchNorm1d, fresh stats: gamma=1, beta=0, mean=0, var=1
            scale = jnp.full((1, dims[i + 1]), 1.0 / np.sqrt(1.0 + eps), jnp.float32)
            shift = jnp.zeros((1, dims[i + 1]), jnp.float32)
            b["mlp"].append((w, bias, scale, shift))
        b["lw"] = jax.random.normal(next(keys), (D0 + mlp_dims[-1], 1),
                                    jnp.float32) / np.sqrt(D0 + mlp_dims[-1])
        b["lb"] = 0.01 * jax.random.normal(next(keys), (1, 1), jnp.float32)
        return b

    params["m"] = make_branch()
    params["c"] = make_branch()
    return params


# ----------------------------------------------------------------------------
# Host-side packing: BN fold, branch fusion, small-param consolidation
# ----------------------------------------------------------------------------
def pack_params(params, D0, num_layers, mlp_dims, compute_dtype):
    L = num_layers
    mlp_dims = tuple(mlp_dims)
    n_mlp = len(mlp_dims)
    H_last = mlp_dims[-1]
    Hmax = max(mlp_dims)
    m, c = params["m"], params["c"]

    def fold(branch):  # fold eval-mode BN into the Linear layer
        ws, bs = [], []
        for (w, b, s, t) in branch["mlp"]:
            ws.append(w * s)          # (din, dout)
            bs.append(b * s + t)      # (1, dout)
        return ws, bs

    wm, bm = fold(m)
    wc, bc = fold(c)

    # Cross params + head-x weights, one lane-major array.
    lwx_m = m["lw"][:D0, 0][None, :]
    lwx_c = c["lw"][:D0, 0][None, :]
    pd0 = jnp.concatenate(
        [m["cw"], m["cb"], c["cw"], c["cb"], lwx_m, lwx_c], axis=0
    ).astype(jnp.float32)                                   # (4L+2, D0)

    # Head-h weights, transposed + zero-padded to the fused [h_m | h_c] layout.
    lwh_m = m["lw"][D0:, 0]
    lwh_c = c["lw"][D0:, 0]
    zero = jnp.zeros((H_last,), jnp.float32)
    col_m = jnp.concatenate([lwh_m, zero])
    col_c = jnp.concatenate([zero, lwh_c])
    ph_t = jnp.stack([col_m, col_c], axis=1).astype(jnp.float32)   # (2*H_last, 2)

    # Fused MLP weights: layer 0 concatenated, deeper layers block-diagonal.
    ws = [jnp.concatenate([wm[0], wc[0]], axis=1).astype(compute_dtype)]
    for j in range(1, n_mlp):
        din, dout = mlp_dims[j - 1], mlp_dims[j]
        z = jnp.zeros((din, dout), jnp.float32)
        top = jnp.concatenate([wm[j], z], axis=1)
        bot = jnp.concatenate([z, wc[j]], axis=1)
        ws.append(jnp.concatenate([top, bot], axis=0).astype(compute_dtype))

    # Folded biases (one row per MLP layer) + head biases in the last row.
    b_rows = []
    for j in range(n_mlp):
        row = jnp.concatenate([bm[j][0], bc[j][0]])
        b_rows.append(jnp.pad(row, (0, 2 * Hmax - row.shape[0])))
    head_row = jnp.zeros((2 * Hmax,), jnp.float32)
    head_row = head_row.at[0].set(m["lb"][0, 0]).at[1].set(c["lb"][0, 0])
    b_rows.append(head_row)
    b_all = jnp.stack(b_rows, axis=0).astype(jnp.float32)   # (n_mlp+1, 2*Hmax)

    return {"pd0": pd0, "ph_t": ph_t, "ws": ws, "b_all": b_all}


def prepare_share_dcn(params, field_dims, embed_dim, num_layers, mlp_dims,
                      compute_dtype=jnp.bfloat16):
    """One-time prep: offsets, dtype-cast embedding table, packed fused params."""
    D0 = len(field_dims) * embed_dim
    offsets = jnp.asarray(
        np.concatenate(([0], np.cumsum(field_dims)[:-1])).astype(np.int32))
    table = params["embed_table"].astype(compute_dtype)     # cast once, not per call
    packed = pack_params(params, D0, num_layers, mlp_dims, compute_dtype)
    return {
        "offsets": offsets,
        "table": table,
        "packed": packed,
        "D0": D0,
        "num_layers": num_layers,
        "mlp_dims": tuple(mlp_dims),
        "compute_dtype": compute_dtype,
    }


# ----------------------------------------------------------------------------
# Tiling / VMEM derivation
# ----------------------------------------------------------------------------
def _round_up(x, m):
    return ((x + m - 1) // m) * m


def _pow2_floor(n):
    n = max(1, int(n))
    return 1 << (n.bit_length() - 1)


def _choose_tile(B, D0, compute_dtype, packed, batch_block, align, min_grid_tiles):
    itemsize = jnp.dtype(compute_dtype).itemsize
    param_bytes = sum(
        int(a.size) * a.dtype.itemsize
        for a in [packed["pd0"], packed["ph_t"], packed["b_all"], *packed["ws"]])

    try:
        vmem_cap = int(pltpu.get_tpu_info().vmem_capacity_bytes)
    except Exception:
        vmem_cap = 64 << 20          # conservative: v7x per-TensorCore VMEM
    budget = int(0.75 * vmem_cap)

    def footprint(tb):
        return (2 * tb * D0 * itemsize       # embed_x block, double-buffered
                + 2 * tb * 2 * 4             # (TB, 2) f32 output, double-buffered
                + 2 * param_bytes            # resident params (conservative x2)
                + (2 << 20))                 # scratch / spill headroom

    tb = max(align, _pow2_floor(min(batch_block, _round_up(B, align))))
    tb = _round_up(tb, align)
    # Fit comfortably in VMEM (matters once D0 is production-sized).
    while tb > align and footprint(tb) > budget:
        tb //= 2
    # Keep >= min_grid_tiles grid steps so both v7x TensorCores get work.
    while tb > align and pl.cdiv(_round_up(B, align), tb) < min_grid_tiles:
        tb //= 2
    tb = max(tb, align)

    b_pad = _round_up(B, tb)
    vmem_limit = int(min(budget, max(footprint(tb) * 2, 32 << 20)))
    return tb, b_pad, vmem_limit, param_bytes


# ----------------------------------------------------------------------------
# Forward wrapper
# ----------------------------------------------------------------------------
def share_dcn_forward(x_idx, prepared, *, batch_block=4096, min_grid_tiles=2):
    """Pallas forward. x_idx: int32 (B, num_fields). Returns (p_m, p_c) each (B,)."""
    B = x_idx.shape[0]
    D0 = prepared["D0"]
    num_layers = prepared["num_layers"]
    mlp_dims = prepared["mlp_dims"]
    compute_dtype = prepared["compute_dtype"]
    packed = prepared["packed"]
    n_mlp = len(mlp_dims)

    # FeaturesEmbedding: per-field offsets, gather, flatten (plain-JAX glue).
    # TODO(synk): move this gather in-kernel (indices via scalar prefetch, table
    # in ANY memory space) to remove the embed_x HBM write+read round-trip.
    idx = x_idx.astype(jnp.int32) + prepared["offsets"][None, :]
    embed_x = jnp.take(prepared["table"], idx, axis=0).reshape(B, D0)

    # Batch tiling: large power-of-two tiles, bf16-friendly alignment,
    # VMEM-budget aware, >=2 tiles for v7x megacore when the batch allows.
    align = 16 if jnp.dtype(compute_dtype) == jnp.dtype(jnp.bfloat16) else 8
    TB, B_pad, vmem_limit, param_bytes = _choose_tile(
        B, D0, compute_dtype, packed, batch_block, align, min_grid_tiles)
    if B_pad != B:
        embed_x = jnp.pad(embed_x, ((0, B_pad - B), (0, 0)))
    grid = (B_pad // TB,)

    const2d = lambda shape: pl.BlockSpec(shape, lambda i: (0, 0))
    in_specs = [
        pl.BlockSpec((TB, D0), lambda i: (i, 0)),        # embed_x: pipelined over batch
        const2d(packed["pd0"].shape),                    # params stay VMEM-resident
        const2d(packed["ph_t"].shape),
        *[const2d(w.shape) for w in packed["ws"]],
        const2d(packed["b_all"].shape),
    ]
    out_spec = pl.BlockSpec((TB, 2), lambda i: (i, 0))

    # Advisory cost estimate (helps XLA overlap the gather producer).
    itemsize = jnp.dtype(compute_dtype).itemsize
    flops_row = 2 * D0 * 2 * mlp_dims[0]
    for j in range(1, n_mlp):
        flops_row += 2 * (2 * mlp_dims[j - 1]) * (2 * mlp_dims[j])
    flops_row += 2 * (2 * mlp_dims[-1]) * 2
    flops_row += num_layers * 2 * 6 * D0
    cost = pl.CostEstimate(
        flops=int(flops_row * B_pad),
        transcendentals=0,
        bytes_accessed=int(B_pad * D0 * itemsize + B_pad * 2 * 4 + param_bytes))

    kernel = _make_dcn_kernel(num_layers, mlp_dims)
    out = pl.pallas_call(
        kernel,
        grid=grid,
        in_specs=in_specs,
        out_specs=out_spec,
        out_shape=jax.ShapeDtypeStruct((B_pad, 2), jnp.float32),
        cost_estimate=cost,
        compiler_params=pltpu.CompilerParams(
            dimension_semantics=("parallel",),           # shard batch across TCs (v7x)
            vmem_limit_bytes=vmem_limit),
    )(embed_x, packed["pd0"], packed["ph_t"], *packed["ws"], packed["b_all"])

    out = out[:B]
    return out[:, 0], out[:, 1]


# ----------------------------------------------------------------------------
# Pure-JAX reference mirroring the PyTorch forward (eval mode)
# ----------------------------------------------------------------------------
def share_dcn_reference(x_idx, params, field_dims, embed_dim, num_layers, mlp_dims):
    B = x_idx.shape[0]
    D0 = len(field_dims) * embed_dim
    offsets = jnp.asarray(
        np.concatenate(([0], np.cumsum(field_dims)[:-1])).astype(np.int32))
    idx = x_idx.astype(jnp.int32) + offsets[None, :]
    ex = jnp.take(params["embed_table"], idx, axis=0).reshape(B, D0)

    def branch(b):
        x = ex
        for i in range(num_layers):
            xw = jnp.sum(x * b["cw"][i], axis=-1, keepdims=True)
            x = ex * xw + b["cb"][i] + x
        h = ex
        for (w, bias, s, t) in b["mlp"]:
            h = jnp.maximum((h @ w + bias) * s + t, 0.0)
        stack = jnp.concatenate([x, h], axis=1)
        return (stack @ b["lw"] + b["lb"])[:, 0]

    return branch(params["m"]), branch(params["c"])


# ----------------------------------------------------------------------------
if __name__ == "__main__":
    # Small, module-consistent shapes.
    field_dims = [10, 20, 30, 40]          # num_fields = 4
    embed_dim = 8                          # embed_output_dim = 32
    num_layers = 2                         # cross layers
    mlp_dims = (32, 16)
    batch = 16

    key = jax.random.PRNGKey(0)
    pkey, xkey = jax.random.split(key)
    params = init_params(pkey, field_dims, embed_dim, num_layers, mlp_dims)

    # x: Long tensor (batch, num_fields), each column in [0, field_dim)
    cols = []
    xkeys = jax.random.split(xkey, len(field_dims))
    for fk, fd in zip(xkeys, field_dims):
        cols.append(jax.random.randint(fk, (batch, 1), 0, fd, dtype=jnp.int32))
    x = jnp.concatenate(cols, axis=1)      # (batch, num_fields) int32

    r_m, r_c = share_dcn_reference(x, params, field_dims, embed_dim, num_layers,
                                   mlp_dims)

    # f32 run with small tiles (grid of 2) — tight correctness + pipeline coverage.
    prep32 = prepare_share_dcn(params, field_dims, embed_dim, num_layers, mlp_dims,
                               compute_dtype=jnp.float32)
    p_m, p_c = share_dcn_forward(x, prep32, batch_block=8)
    jax.block_until_ready((p_m, p_c))
    np.testing.assert_allclose(np.asarray(p_m), np.asarray(r_m), rtol=1e-5, atol=1e-5)
    np.testing.assert_allclose(np.asarray(p_c), np.asarray(r_c), rtol=1e-5, atol=1e-5)
    assert p_m.shape == (batch,) and p_c.shape == (batch,)

    # Default production config: bf16 embed/weights, f32 activations — loose check.
    prep16 = prepare_share_dcn(params, field_dims, embed_dim, num_layers, mlp_dims)
    q_m, q_c = share_dcn_forward(x, prep16)
    jax.block_until_ready((q_m, q_c))
    np.testing.assert_allclose(np.asarray(q_m), np.asarray(r_m), rtol=5e-2, atol=5e-2)
    np.testing.assert_allclose(np.asarray(q_c), np.asarray(r_c), rtol=5e-2, atol=5e-2)

    print("KERNEL_OK")
</pallas_src>

<mosaic_0001>
module attributes {stable_mosaic.version = 11 : i64} {
  func.func @kernel(%arg0: i32, %arg1: memref<8x32xf32, #tpu.memory_space<vmem>>, %arg2: memref<10x32xf32, #tpu.memory_space<vmem>>, %arg3: memref<32x2xf32, #tpu.memory_space<vmem>>, %arg4: memref<32x64xf32, #tpu.memory_space<vmem>>, %arg5: memref<64x32xf32, #tpu.memory_space<vmem>>, %arg6: memref<3x64xf32, #tpu.memory_space<vmem>>, %arg7: memref<8x2xf32, #tpu.memory_space<vmem>>) attributes {dimension_semantics = [#tpu.dimension_semantics<parallel>], iteration_bounds = array<i64: 2>, scalar_prefetch = 0 : i64, scratch_operands = 0 : i64, tpu.core_type = #tpu.core_type<tc>, window_params = [{transform_indices = @transform_0, window_bounds = array<i64: 8, 32>}, {pipeline_mode = #tpu.pipeline_mode<synchronous>, transform_indices = @transform_1, window_bounds = array<i64: 10, 32>}, {pipeline_mode = #tpu.pipeline_mode<synchronous>, transform_indices = @transform_2, window_bounds = array<i64: 32, 2>}, {pipeline_mode = #tpu.pipeline_mode<synchronous>, transform_indices = @transform_3, window_bounds = array<i64: 32, 64>}, {pipeline_mode = #tpu.pipeline_mode<synchronous>, transform_indices = @transform_4, window_bounds = array<i64: 64, 32>}, {pipeline_mode = #tpu.pipeline_mode<synchronous>, transform_indices = @transform_5, window_bounds = array<i64: 3, 64>}, {transform_indices = @transform_6, window_bounds = array<i64: 8, 2>}]} {
    %c0 = arith.constant 0 : index
    %c0_0 = arith.constant 0 : index
    %0 = vector.load %arg1[%c0, %c0_0] : memref<8x32xf32, #tpu.memory_space<vmem>>, vector<8x32xf32>
    %c0_1 = arith.constant 0 : index
    %c0_2 = arith.constant 0 : index
    %1 = vector.load %arg2[%c0_1, %c0_2] : memref<10x32xf32, #tpu.memory_space<vmem>>, vector<10x32xf32>
    %c0_3 = arith.constant 0 : index
    %c0_4 = arith.constant 0 : index
    %2 = vector.load %arg6[%c0_3, %c0_4] : memref<3x64xf32, #tpu.memory_space<vmem>>, vector<3x64xf32>
    %3 = vector.extract_strided_slice %1 {offsets = [0, 0], sizes = [1, 32], strides = [1, 1]} : vector<10x32xf32> to vector<1x32xf32>
    %4 = vector.extract_strided_slice %1 {offsets = [2, 0], sizes = [1, 32], strides = [1, 1]} : vector<10x32xf32> to vector<1x32xf32>
    %5 = vector.broadcast %3 : vector<1x32xf32> to vector<8x32xf32>
    %6 = arith.mulf %0, %5 : vector<8x32xf32>
    %cst = arith.constant dense<0.000000e+00> : vector<8xf32>
    %7 = vector.multi_reduction <add>, %6, %cst [1] : vector<8x32xf32> to vector<8xf32>
    %8 = vector.shape_cast %7 : vector<8xf32> to vector<8x1xf32>
    %9 = vector.broadcast %8 : vector<8x1xf32> to vector<8x32xf32>
    %10 = arith.mulf %0, %9 : vector<8x32xf32>
    %11 = vector.broadcast %4 : vector<1x32xf32> to vector<8x32xf32>
    %12 = arith.addf %10, %11 : vector<8x32xf32>
    %13 = arith.addf %12, %0 : vector<8x32xf32>
    %14 = vector.extract_strided_slice %1 {offsets = [1, 0], sizes = [1, 32], strides = [1, 1]} : vector<10x32xf32> to vector<1x32xf32>
    %15 = vector.extract_strided_slice %1 {offsets = [3, 0], sizes = [1, 32], strides = [1, 1]} : vector<10x32xf32> to vector<1x32xf32>
    %16 = vector.broadcast %14 : vector<1x32xf32> to vector<8x32xf32>
    %17 = arith.mulf %13, %16 : vector<8x32xf32>
    %cst_5 = arith.constant dense<0.000000e+00> : vector<8xf32>
    %18 = vector.multi_reduction <add>, %17, %cst_5 [1] : vector<8x32xf32> to vector<8xf32>
    %19 = vector.shape_cast %18 : vector<8xf32> to vector<8x1xf32>
    %20 = vector.broadcast %19 : vector<8x1xf32> to vector<8x32xf32>
    %21 = arith.mulf %0, %20 : vector<8x32xf32>
    %22 = vector.broadcast %15 : vector<1x32xf32> to vector<8x32xf32>
    %23 = arith.addf %21, %22 : vector<8x32xf32>
    %24 = arith.addf %23, %13 : vector<8x32xf32>
    %25 = vector.extract_strided_slice %1 {offsets = [4, 0], sizes = [1, 32], strides = [1, 1]} : vector<10x32xf32> to vector<1x32xf32>
    %26 = vector.extract_strided_slice %1 {offsets = [6, 0], sizes = [1, 32], strides = [1, 1]} : vector<10x32xf32> to vector<1x32xf32>
    %27 = vector.broadcast %25 : vector<1x32xf32> to vector<8x32xf32>
    %28 = arith.mulf %0, %27 : vector<8x32xf32>
    %cst_6 = arith.constant dense<0.000000e+00> : vector<8xf32>
    %29 = vector.multi_reduction <add>, %28, %cst_6 [1] : vector<8x32xf32> to vector<8xf32>
    %30 = vector.shape_cast %29 : vector<8xf32> to vector<8x1xf32>
    %31 = vector.broadcast %30 : vector<8x1xf32> to vector<8x32xf32>
    %32 = arith.mulf %0, %31 : vector<8x32xf32>
    %33 = vector.broadcast %26 : vector<1x32xf32> to vector<8x32xf32>
    %34 = arith.addf %32, %33 : vector<8x32xf32>
    %35 = arith.addf %34, %0 : vector<8x32xf32>
    %36 = vector.extract_strided_slice %1 {offsets = [5, 0], sizes = [1, 32], strides = [1, 1]} : vector<10x32xf32> to vector<1x32xf32>
    %37 = vector.extract_strided_slice %1 {offsets = [7, 0], sizes = [1, 32], strides = [1, 1]} : vector<10x32xf32> to vector<1x32xf32>
    %38 = vector.broadcast %36 : vector<1x32xf32> to vector<8x32xf32>
    %39 = arith.mulf %35, %38 : vector<8x32xf32>
    %cst_7 = arith.constant dense<0.000000e+00> : vector<8xf32>
    %40 = vector.multi_reduction <add>, %39, %cst_7 [1] : vector<8x32xf32> to vector<8xf32>
    %41 = vector.shape_cast %40 : vector<8xf32> to vector<8x1xf32>
    %42 = vector.broadcast %41 : vector<8x1xf32> to vector<8x32xf32>
    %43 = arith.mulf %0, %42 : vector<8x32xf32>
    %44 = vector.broadcast %37 : vector<1x32xf32> to vector<8x32xf32>
    %45 = arith.addf %43, %44 : vector<8x32xf32>
    %46 = arith.addf %45, %35 : vector<8x32xf32>
    %c0_8 = arith.constant 0 : index
    %c0_9 = arith.constant 0 : index
    %47 = vector.load %arg4[%c0_8, %c0_9] : memref<32x64xf32, #tpu.memory_space<vmem>>, vector<32x64xf32>
    %cst_10 = arith.constant dense<0.000000e+00> : vector<8x64xf32>
    %48 = tpu.matmul %0, %47, %cst_10 {dimension_numbers = #tpu.dot_dimension_numbers<[1], [0], [0], [1], [0, 0, 1, 1], [], []>} : vector<8x32xf32>, vector<32x64xf32>, vector<8x64xf32> -> vector<8x64xf32>
    %49 = vector.extract_strided_slice %2 {offsets = [0, 0], sizes = [1, 64], strides = [1, 1]} : vector<3x64xf32> to vector<1x64xf32>
    %50 = vector.broadcast %49 : vector<1x64xf32> to vector<8x64xf32>
    %51 = arith.addf %48, %50 : vector<8x64xf32>
    %cst_11 = arith.constant 0.000000e+00 : f32
    %52 = vector.broadcast %cst_11 : f32 to vector<8x64xf32>
    %53 = arith.maximumf %51, %52 : vector<8x64xf32>
    %c0_12 = arith.constant 0 : index
    %c0_13 = arith.constant 0 : index
    %54 = vector.load %arg5[%c0_12, %c0_13] : memref<64x32xf32, #tpu.memory_space<vmem>>, vector<64x32xf32>
    %cst_14 = arith.constant dense<0.000000e+00> : vector<8x32xf32>
    %55 = tpu.matmul %53, %54, %cst_14 {dimension_numbers = #tpu.dot_dimension_numbers<[1], [0], [0], [1], [0, 0, 1, 1], [], []>} : vector<8x64xf32>, vector<64x32xf32>, vector<8x32xf32> -> vector<8x32xf32>
    %56 = vector.extract_strided_slice %2 {offsets = [1, 0], sizes = [1, 32], strides = [1, 1]} : vector<3x64xf32> to vector<1x32xf32>
    %57 = vector.broadcast %56 : vector<1x32xf32> to vector<8x32xf32>
    %58 = arith.addf %55, %57 : vector<8x32xf32>
    %cst_15 = arith.constant 0.000000e+00 : f32
    %59 = vector.broadcast %cst_15 : f32 to vector<8x32xf32>
    %60 = arith.maximumf %58, %59 : vector<8x32xf32>
    %c0_16 = arith.constant 0 : index
    %c0_17 = arith.constant 0 : index
    %61 = vector.load %arg3[%c0_16, %c0_17] : memref<32x2xf32, #tpu.memory_space<vmem>>, vector<32x2xf32>
    %cst_18 = arith.constant dense<0.000000e+00> : vector<8x2xf32>
    %62 = tpu.matmul %60, %61, %cst_18 {dimension_numbers = #tpu.dot_dimension_numbers<[1], [0], [0], [1], [0, 0, 1, 1], [], []>} : vector<8x32xf32>, vector<32x2xf32>, vector<8x2xf32> -> vector<8x2xf32>
    %63 = vector.extract_strided_slice %1 {offsets = [8, 0], sizes = [1, 32], strides = [1, 1]} : vector<10x32xf32> to vector<1x32xf32>
    %64 = vector.extract_strided_slice %1 {offsets = [9, 0], sizes = [1, 32], strides = [1, 1]} : vector<10x32xf32> to vector<1x32xf32>
    %65 = vector.extract_strided_slice %2 {offsets = [2, 0], sizes = [1, 1], strides = [1, 1]} : vector<3x64xf32> to vector<1x1xf32>
    %66 = vector.extract_strided_slice %2 {offsets = [2, 1], sizes = [1, 1], strides = [1, 1]} : vector<3x64xf32> to vector<1x1xf32>
    %67 = vector.broadcast %63 : vector<1x32xf32> to vector<8x32xf32>
    %68 = arith.mulf %24, %67 : vector<8x32xf32>
    %cst_19 = arith.constant dense<0.000000e+00> : vector<8xf32>
    %69 = vector.multi_reduction <add>, %68, %cst_19 [1] : vector<8x32xf32> to vector<8xf32>
    %70 = vector.shape_cast %69 : vector<8xf32> to vector<8x1xf32>
    %71 = vector.broadcast %64 : vector<1x32xf32> to vector<8x32xf32>
    %72 = arith.mulf %46, %71 : vector<8x32xf32>
    %cst_20 = arith.constant dense<0.000000e+00> : vector<8xf32>
    %73 = vector.multi_reduction <add>, %72, %cst_20 [1] : vector<8x32xf32> to vector<8xf32>
    %74 = vector.shape_cast %73 : vector<8xf32> to vector<8x1xf32>
    %75 = vector.extract_strided_slice %62 {offsets = [0, 0], sizes = [8, 1], strides = [1, 1]} : vector<8x2xf32> to vector<8x1xf32>
    %76 = arith.addf %70, %75 : vector<8x1xf32>
    %77 = vector.broadcast %65 : vector<1x1xf32> to vector<8x1xf32>
    %78 = arith.addf %76, %77 : vector<8x1xf32>
    %c0_21 = arith.constant 0 : index
    %c0_22 = arith.constant 0 : index
    %79 = vector.load %arg7[%c0_21, %c0_22] : memref<8x2xf32, #tpu.memory_space<vmem>>, vector<8x1xf32>
    tpu.vector_store %arg7[%c0_21, %c0_22], %78 {strides = array<i32>} : memref<8x2xf32, #tpu.memory_space<vmem>>, vector<8x1xf32>,
    %80 = vector.extract_strided_slice %62 {offsets = [0, 1], sizes = [8, 1], strides = [1, 1]} : vector<8x2xf32> to vector<8x1xf32>
    %81 = arith.addf %74, %80 : vector<8x1xf32>
    %82 = vector.broadcast %66 : vector<1x1xf32> to vector<8x1xf32>
    %83 = arith.addf %81, %82 : vector<8x1xf32>
    %c0_23 = arith.constant 0 : index
    %c1 = arith.constant 1 : index
    %84 = vector.load %arg7[%c0_23, %c1] : memref<8x2xf32, #tpu.memory_space<vmem>>, vector<8x1xf32>
    tpu.vector_store %arg7[%c0_23, %c1], %83 {strides = array<i32>} : memref<8x2xf32, #tpu.memory_space<vmem>>, vector<8x1xf32>,
    return
  }
  func.func @transform_0(%arg0: i32) -> (i32, i32) {
    %c0_i32 = arith.constant 0 : i32
    %c0_i32_0 = arith.constant 0 : i32
    return %arg0, %c0_i32 : i32, i32
  }
  func.func @transform_1(%arg0: i32) -> (i32, i32) {
    %c0_i32 = arith.constant 0 : i32
    %c0_i32_0 = arith.constant 0 : i32
    %c0_i32_1 = arith.constant 0 : i32
    return %c0_i32, %c0_i32_0 : i32, i32
  }
  func.func @transform_2(%arg0: i32) -> (i32, i32) {
    %c0_i32 = arith.constant 0 : i32
    %c0_i32_0 = arith.constant 0 : i32
    %c0_i32_1 = arith.constant 0 : i32
    return %c0_i32, %c0_i32_0 : i32, i32
  }
  func.func @transform_3(%arg0: i32) -> (i32, i32) {
    %c0_i32 = arith.constant 0 : i32
    %c0_i32_0 = arith.constant 0 : i32
    %c0_i32_1 = arith.constant 0 : i32
    return %c0_i32, %c0_i32_0 : i32, i32
  }
  func.func @transform_4(%arg0: i32) -> (i32, i32) {
    %c0_i32 = arith.constant 0 : i32
    %c0_i32_0 = arith.constant 0 : i32
    %c0_i32_1 = arith.constant 0 : i32
    return %c0_i32, %c0_i32_0 : i32, i32
  }
  func.func @transform_5(%arg0: i32) -> (i32, i32) {
    %c0_i32 = arith.constant 0 : i32
    %c0_i32_0 = arith.constant 0 : i32
    %c0_i32_1 = arith.constant 0 : i32
    return %c0_i32, %c0_i32_0 : i32, i32
  }
  func.func @transform_6(%arg0: i32) -> (i32, i32) {
    %c0_i32 = arith.constant 0 : i32
    %c0_i32_0 = arith.constant 0 : i32
    return %arg0, %c0_i32 : i32, i32
  }
}

</mosaic_0001>

<llo_original>
// kernel: tpu_custom_call.1
$region0: #{tpu_custom_call.1}
  #allocation0 [shape = 'u32[]', space=smem, size = 0x4, offset = 0x4, fixed_abs, tag = 'smem constant byte address 0x4 - core index']
  #allocation1 [shape = 'u32[72,128]{1,0:T(1,128)}', space=vmem, size = 0x9000, scoped, tag = 'internal scratch']
  %s0 = inlined_call_operand.vmem [shape: f32[16,32], index: 0, kind: input, shape index: {}]
  %s1 = inlined_call_operand.vmem [shape: f32[10,32], index: 1, kind: input, shape index: {}]
  %s2 = inlined_call_operand.vmem [shape: f32[32,2], index: 2, kind: input, shape index: {}]
  %s3 = inlined_call_operand.vmem [shape: f32[32,64], index: 3, kind: input, shape index: {}]
  %s4 = inlined_call_operand.vmem [shape: f32[64,32], index: 4, kind: input, shape index: {}]
  %s5 = inlined_call_operand.vmem [shape: f32[3,64], index: 5, kind: input, shape index: {}]
  %s6 = inlined_call_operand.vmem [shape: f32[16,2], index: 6, kind: output, shape index: {}]
  %s7 = sld [smem:[#allocation0]]
  $region57: #{tpu_custom_call.1} parent=0
    _
  %s9 = ssub.s32 1, %s7
  %s10 = scalar_select 0, %s9, %s7
  loop: start=0, step=1, limit=4
  $region2: #{tpu_custom_call.1} parent=0 // loop_pre_header
    _
  $region3: #{tpu_custom_call.1} parent=0 // loop_header
    %s12 = sphi 0, %s16
    %p13 = scmp.ge.s32.totalorder %s12, 4
    %s22 = sphi 0, %s24
    %s25 = sphi 0, %s22
    %s26 = sphi 0, %s25
    %s42 = sphi 0, %s26
    %s46 = sphi 0, %s46
    %s48 = sphi 0, %s46
    %s49 = sphi 0, %s48
    %s63 = sphi 0, %s49
    %s67 = sphi 0, %s67
    %s69 = sphi 0, %s67
    %s70 = sphi 0, %s69
    %s84 = sphi 0, %s70
    %s88 = sphi 0, %s88
    %s90 = sphi 0, %s88
    %s91 = sphi 0, %s90
    %s105 = sphi 0, %s91
    %s109 = sphi 0, %s109
    %s111 = sphi 0, %s109
    %s112 = sphi 0, %s111
    %s126 = sphi 0, %s112
    %s130 = sphi 0, %s130
    %s132 = sphi 0, %s130
    %s133 = sphi 0, %s132
    %s147 = sphi 0, %s133
    %s153 = sphi 0, %s155
    %s156 = sphi 0, %s153
    %s157 = sphi 0, %s156
    %s173 = sphi 0, %s157
  $region4: #{tpu_custom_call.1} parent=0 // loop_header_branch
    %15 = sbr.rel (%p13) target = $region8
  $region5: #{tpu_custom_call.1} parent=0 // loop_body
    %s17 = ssub.s32 %s12, 1
    %s18 = ssub.s32 %s12, 2
    %s19 = sadd.s32 %s12, 1
    %s20 = ssub.s32 %s12, %s19
    %p21 = scmp.eq.s32.totalorder %s20, 0
    %s23 = sadd.s32 %s22, 1
    %s24 = scalar_select %p21, %s22, %s23
    %p27 = pneg %p21
    %p28 = scmp.eq.s32.totalorder %s12, 1
    %p29 = por %p27, %p28
    %p30 = scmp.ne.s32.totalorder %s22, %s25
    %p31 = scmp.eq.s32.totalorder %s12, 0
    %p32 = por %p30, %p31
    %p33 = scmp.ne.s32.totalorder %s22, %s25
    %p34 = scmp.eq.s32.totalorder %s17, 1
    %p35 = por %p33, %p34
    %p36 = scmp.ne.s32.totalorder %s25, %s26
    %p37 = scmp.eq.s32.totalorder %s17, 0
    %p38 = por %p36, %p37
    %p39 = scmp.ne.s32.totalorder %s25, %s26
    %p40 = scmp.eq.s32.totalorder %s18, 1
    %p41 = por %p39, %p40
    %p43 = scmp.ne.s32.totalorder %s26, %s42
    %p44 = scmp.eq.s32.totalorder %s18, 0
    %p45 = por %p43, %p44
    %s47 = sadd.s32 %s46, 1
    %p50 = scmp.eq.s32.totalorder %s12, 1
    %p51 = scmp.ne.s32.totalorder %s46, %s48
    %p52 = scmp.eq.s32.totalorder %s12, 0
    %p53 = por %p51, %p52
    %p54 = scmp.ne.s32.totalorder %s46, %s48
    %p55 = scmp.eq.s32.totalorder %s17, 1
    %p56 = por %p54, %p55
    %p57 = scmp.ne.s32.totalorder %s48, %s49
    %p58 = scmp.eq.s32.totalorder %s17, 0
    %p59 = por %p57, %p58
    %p60 = scmp.ne.s32.totalorder %s48, %s49
    %p61 = scmp.eq.s32.totalorder %s18, 1
    %p62 = por %p60, %p61
    %p64 = scmp.ne.s32.totalorder %s49, %s63
    %p65 = scmp.eq.s32.totalorder %s18, 0
    %p66 = por %p64, %p65
    %s68 = sadd.s32 %s67, 1
    %p71 = scmp.eq.s32.totalorder %s12, 1
    %p72 = scmp.ne.s32.totalorder %s67, %s69
    %p73 = scmp.eq.s32.totalorder %s12, 0
    %p74 = por %p72, %p73
    %p75 = scmp.ne.s32.totalorder %s67, %s69
    %p76 = scmp.eq.s32.totalorder %s17, 1
    %p77 = por %p75, %p76
    %p78 = scmp.ne.s32.totalorder %s69, %s70
    %p79 = scmp.eq.s32.totalorder %s17, 0
    %p80 = por %p78, %p79
    %p81 = scmp.ne.s32.totalorder %s69, %s70
    %p82 = scmp.eq.s32.totalorder %s18, 1
    %p83 = por %p81, %p82
    %p85 = scmp.ne.s32.totalorder %s70, %s84
    %p86 = scmp.eq.s32.totalorder %s18, 0
    %p87 = por %p85, %p86
    %s89 = sadd.s32 %s88, 1
    %p92 = scmp.eq.s32.totalorder %s12, 1
    %p93 = scmp.ne.s32.totalorder %s88, %s90
    %p94 = scmp.eq.s32.totalorder %s12, 0
    %p95 = por %p93, %p94
    %p96 = scmp.ne.s32.totalorder %s88, %s90
    %p97 = scmp.eq.s32.totalorder %s17, 1
    %p98 = por %p96, %p97
    %p99 = scmp.ne.s32.totalorder %s90, %s91
    %p100 = scmp.eq.s32.totalorder %s17, 0
    %p101 = por %p99, %p100
    %p102 = scmp.ne.s32.totalorder %s90, %s91
    %p103 = scmp.eq.s32.totalorder %s18, 1
    %p104 = por %p102, %p103
    %p106 = scmp.ne.s32.totalorder %s91, %s105
    %p107 = scmp.eq.s32.totalorder %s18, 0
    %p108 = por %p106, %p107
    %s110 = sadd.s32 %s109, 1
    %p113 = scmp.eq.s32.totalorder %s12, 1
    %p114 = scmp.ne.s32.totalorder %s109, %s111
    %p115 = scmp.eq.s32.totalorder %s12, 0
    %p116 = por %p114, %p115
    %p117 = scmp.ne.s32.totalorder %s109, %s111
    %p118 = scmp.eq.s32.totalorder %s17, 1
    %p119 = por %p117, %p118
    %p120 = scmp.ne.s32.totalorder %s111, %s112
    %p121 = scmp.eq.s32.totalorder %s17, 0
    %p122 = por %p120, %p121
    %p123 = scmp.ne.s32.totalorder %s111, %s112
    %p124 = scmp.eq.s32.totalorder %s18, 1
    %p125 = por %p123, %p124
    %p127 = scmp.ne.s32.totalorder %s112, %s126
    %p128 = scmp.eq.s32.totalorder %s18, 0
    %p129 = por %p127, %p128
    %s131 = sadd.s32 %s130, 1
    %p134 = scmp.eq.s32.totalorder %s12, 1
    %p135 = scmp.ne.s32.totalorder %s130, %s132
    %p136 = scmp.eq.s32.totalorder %s12, 0
    %p137 = por %p135, %p136
    %p138 = scmp.ne.s32.totalorder %s130, %s132
    %p139 = scmp.eq.s32.totalorder %s17, 1
    %p140 = por %p138, %p139
    %p141 = scmp.ne.s32.totalorder %s132, %s133
    %p142 = scmp.eq.s32.totalorder %s17, 0
    %p143 = por %p141, %p142
    %p144 = scmp.ne.s32.totalorder %s132, %s133
    %p145 = scmp.eq.s32.totalorder %s18, 1
    %p146 = por %p144, %p145
    %p148 = scmp.ne.s32.totalorder %s133, %s147
    %p149 = scmp.eq.s32.totalorder %s18, 0
    %p150 = por %p148, %p149
    %s151 = ssub.s32 %s12, %s19
    %p152 = scmp.eq.s32.totalorder %s151, 0
    %s154 = sadd.s32 %s153, 1
    %s155 = scalar_select %p152, %s153, %s154
    %p158 = pneg %p152
    %p159 = scmp.eq.s32.totalorder %s12, 1
    %p160 = por %p158, %p159
    %p161 = scmp.ne.s32.totalorder %s153, %s156
    %p162 = scmp.eq.s32.totalorder %s12, 0
    %p163 = por %p161, %p162
    %p164 = scmp.ne.s32.totalorder %s153, %s156
    %p165 = scmp.eq.s32.totalorder %s17, 1
    %p166 = por %p164, %p165
    %p167 = scmp.ne.s32.totalorder %s156, %s157
    %p168 = scmp.eq.s32.totalorder %s17, 0
    %p169 = por %p167, %p168
    %p170 = scmp.ne.s32.totalorder %s156, %s157
    %p171 = scmp.eq.s32.totalorder %s18, 1
    %p172 = por %p170, %p171
    %p174 = scmp.ne.s32.totalorder %s157, %s173
    %p175 = scmp.eq.s32.totalorder %s18, 0
    %p176 = por %p174, %p175
    %p177 = scmp.le.s32.totalorder 1, %s12
    %p178 = scmp.lt.s32.totalorder %s12, 3
    %p179 = pnand %p177, %p178
    %p180 = pneg %p179
    // Predicated region
    $region9: #{tpu_custom_call.1} parent=5 // pred_check
      _
    $region10: #{tpu_custom_call.1} parent=5 // pred_check_branch
      %182 = sbr.rel (%p179) target = $region12
    $region11: #{tpu_custom_call.1} parent=5 // pred_region
      %s183 = ssub.s32 %s12, 1
      // Predicated region
      $region13: #{tpu_custom_call.1} parent=11 // pred_check
        %p184 = pneg %p59
      $region14: #{tpu_custom_call.1} parent=11 // pred_check_branch
        %186 = sbr.rel (%p184) target = $region16
      $region15: #{tpu_custom_call.1} parent=11 // pred_region
        _
      $region16: #{tpu_custom_call.1} parent=11 // pred_fallthru
        _
      // Predicated region
      $region17: #{tpu_custom_call.1} parent=11 // pred_check
        %p187 = pneg %p80
      $region18: #{tpu_custom_call.1} parent=11 // pred_check_branch
        %189 = sbr.rel (%p187) target = $region20
      $region19: #{tpu_custom_call.1} parent=11 // pred_region
        _
      $region20: #{tpu_custom_call.1} parent=11 // pred_fallthru
        _
      // Predicated region
      $region21: #{tpu_custom_call.1} parent=11 // pred_check
        %p190 = pneg %p101
      $region22: #{tpu_custom_call.1} parent=11 // pred_check_branch
        %192 = sbr.rel (%p190) target = $region24
      $region23: #{tpu_custom_call.1} parent=11 // pred_region
        _
      $region24: #{tpu_custom_call.1} parent=11 // pred_fallthru
        _
      // Predicated region
      $region25: #{tpu_custom_call.1} parent=11 // pred_check
        %p193 = pneg %p122
      $region26: #{tpu_custom_call.1} parent=11 // pred_check_branch
        %195 = sbr.rel (%p193) target = $region28
      $region27: #{tpu_custom_call.1} parent=11 // pred_region
        _
      $region28: #{tpu_custom_call.1} parent=11 // pred_fallthru
        _
      // Predicated region
      $region29: #{tpu_custom_call.1} parent=11 // pred_check
        %p196 = pneg %p143
      $region30: #{tpu_custom_call.1} parent=11 // pred_check_branch
        %198 = sbr.rel (%p196) target = $region32
      $region31: #{tpu_custom_call.1} parent=11 // pred_region
        _
      $region32: #{tpu_custom_call.1} parent=11 // pred_fallthru
        _
    $region12: #{tpu_custom_call.1} parent=5 // pred_fallthru
      _
    %p199 = scmp.lt.s32.totalorder %s12, 2
    // Predicated region
    $region33: #{tpu_custom_call.1} parent=5 // pred_check
      %p200 = pneg %p199
    $region34: #{tpu_custom_call.1} parent=5 // pred_check_branch
      %202 = sbr.rel (%p200) target = $region36
    $region35: #{tpu_custom_call.1} parent=5 // pred_region
      // Predicated region
      $region37: #{tpu_custom_call.1} parent=35 // pred_check
        %p203 = pneg %p32
      $region38: #{tpu_custom_call.1} parent=35 // pred_check_branch
        %205 = sbr.rel (%p203) target = $region40
      $region39: #{tpu_custom_call.1} parent=35 // pred_region
        %p206 = scmp.lt.s32.totalorder %s12, 1
        %s207 = scalar_select %p206, %s12, 1
        %s208 = smul.addr %s207, 8
        %s209 = scalar_lea.vmem %s0, %s208
      $region40: #{tpu_custom_call.1} parent=35 // pred_fallthru
        _
    $region36: #{tpu_custom_call.1} parent=5 // pred_fallthru
      _
    %p210 = scmp.le.s32.totalorder 1, %s12
    %p211 = scmp.lt.s32.totalorder %s12, 3
    %p212 = pnand %p210, %p211
    %p213 = pneg %p212
    // Predicated region
    $region41: #{tpu_custom_call.1} parent=5 // pred_check
      _
    $region42: #{tpu_custom_call.1} parent=5 // pred_check_branch
      %215 = sbr.rel (%p212) target = $region44
    $region43: #{tpu_custom_call.1} parent=5 // pred_region
      %s216 = ssub.s32 %s12, 1
      %p217 = scmp.lt.s32.totalorder %s17, 1
      %s218 = scalar_select %p217, %s17, 1
      %s219 = smul.addr %s218, 8
      %s220 = scalar_lea.vmem %s0, %s219
      %p221 = pneg %p38
      %p222 = pneg %p35
      %p223 = pneg %p59
      %p224 = pneg %p56
      %p225 = pneg %p80
      %p226 = pneg %p77
      %p227 = pneg %p101
      %p228 = pneg %p98
      %p229 = pneg %p122
      %p230 = pneg %p119
      %p231 = pneg %p143
      %p232 = pneg %p140
      %p233 = pneg %p169
      %p234 = pneg %p166
      %p235 = scmp.lt.s32.totalorder %s17, 1
      %s236 = scalar_select %p235, %s17, 1
      %s237 = smul.addr %s236, 8
      %s238 = scalar_lea.vmem %s6, %s237
      %p239 = scmp.lt.s32.totalorder %s17, 1
      %s240 = scalar_select %p239, %s17, 1
      %s241 = smul.addr %s240, 8
      %s242 = scalar_lea.vmem %s0, %s241
      %p243 = scmp.lt.s32.totalorder %s17, 1
      %s244 = scalar_select %p243, %s17, 1
      %s245 = smul.addr %s244, 8
      %s246 = scalar_lea.vmem %s6, %s245
      %v247 = vld [vmem:[%s242] sm:$0xff]
      %v248 = vld [vmem:[%s1] sm:$0xff]
      %v249 = vld [vmem:[%s1 + $0x8] sm:$0x3]
      %v250 = vld [vmem:[%s5] sm:$0x7]
      %v251 = vperm.slane %v248, 0
      %v252 = vmul.f32 %v247, %v251
      %vm253 = vcmask 261120
      %v254 = vsel %vm253, %v252, 0.0
      %255 = vadd.xlane.f32.xlu0 %v254
      %v256 = vpop.xlane.xlu0 %255
      %v257 = vmul.f32 %v247, %v256
      %v258 = vperm.slane %v248, 2
      %v259 = vadd.f32 %v257, %v258
      %v260 = vadd.f32 %v259, %v247
      %v261 = vperm.slane %v248, 1
      %v262 = vmul.f32 %v260, %v261
      %v263 = vsel %vm253, %v262, 0.0
      %264 = vadd.xlane.f32.xlu0 %v263
      %v265 = vpop.xlane.xlu0 %264
      %v266 = vmul.f32 %v247, %v265
      %v267 = vperm.slane %v248, 3
      %v268 = vadd.f32 %v266, %v267
      %v269 = vadd.f32 %v268, %v260
      %v270 = vperm.slane %v248, 4
      %v271 = vmul.f32 %v247, %v270
      %v272 = vsel %vm253, %v271, 0.0
      %273 = vadd.xlane.f32.xlu0 %v272
      %v274 = vpop.xlane.xlu0 %273
      %v275 = vmul.f32 %v247, %v274
      %v276 = vperm.slane %v248, 6
      %v277 = vadd.f32 %v275, %v276
      %v278 = vadd.f32 %v277, %v247
      %v279 = vperm.slane %v248, 5
      %v280 = vmul.f32 %v278, %v279
      %v281 = vsel %vm253, %v280, 0.0
      %282 = vadd.xlane.f32.xlu0 %v281
      %v283 = vpop.xlane.xlu0 %282
      %v284 = vmul.f32 %v247, %v283
      %v285 = vperm.slane %v248, 7
      %v286 = vadd.f32 %v284, %v285
      %v287 = vadd.f32 %v286, %v278
      %v288 = vld [vmem:[%s3] sm:$0xff]
      %v289 = vld [vmem:[%s3 + $0x8] sm:$0xff]
      %v290 = vld [vmem:[%s3 + $0x10] sm:$0xff]
      %v291 = vld [vmem:[%s3 + $0x18] sm:$0xff]
      %v292 = vperm.slane %v250, 0
      %v294 = vsel %vm253, %v247, 0
      %296 = vmatpush.msra.mxu0 0.0
      %297 = vmatpush.msra.mxu0 0.0
      %298 = vmatpush.msra.mxu0 0.0
      %299 = vmatpush.msra.mxu0 0.0
      %300 = vmatpush.msra.mxu0 0.0
      %301 = vmatpush.msra.mxu0 0.0
      %302 = vmatpush.msra.mxu0 0.0
      %303 = vmatpush.msra.mxu0 0.0
      %304 = vmatpush.msra.mxu0 0.0
      %305 = vmatpush.msra.mxu0 0.0
      %306 = vmatpush.msra.mxu0 0.0
      %307 = vmatpush.msra.mxu0 0.0
      %308 = vmatpush.msra.mxu0 %v291
      %309 = vmatpush.msra.mxu0 %v290
      %310 = vmatpush.msra.mxu0 %v289
      %311 = vmatpush.msra.mxu0 %v288
      %312 = vmatmul.f32.gmra.mxu0 %v294
      %v313 = vpop.f32.mrf.mxu0
      %v314 = vadd.f32 %v292, %v313
      %315 = vdwg.mxu0
      %v316 = vmax.f32 %v314, 0.0
      %v317 = vld [vmem:[%s4] sm:$0xff]
      %v318 = vld [vmem:[%s4 + $0x8] sm:$0xff]
      %v319 = vld [vmem:[%s4 + $0x10] sm:$0xff]
      %v320 = vld [vmem:[%s4 + $0x18] sm:$0xff]
      %v321 = vld [vmem:[%s4 + $0x20] sm:$0xff]
      %v322 = vld [vmem:[%s4 + $0x28] sm:$0xff]
      %v323 = vld [vmem:[%s4 + $0x30] sm:$0xff]
      %v324 = vld [vmem:[%s4 + $0x38] sm:$0xff]
      %v325 = vperm.slane %v250, 1
      %vm326 = vcmask 523264
      %v328 = vsel %vm326, %v316, 0
      %330 = vmatpush.msra.mxu0 0.0
      %331 = vmatpush.msra.mxu0 0.0
      %332 = vmatpush.msra.mxu0 0.0
      %333 = vmatpush.msra.mxu0 0.0
      %334 = vmatpush.msra.mxu0 0.0
      %335 = vmatpush.msra.mxu0 0.0
      %336 = vmatpush.msra.mxu0 0.0
      %337 = vmatpush.msra.mxu0 0.0
      %338 = vmatpush.msra.mxu0 %v324
      %339 = vmatpush.msra.mxu0 %v323
      %340 = vmatpush.msra.mxu0 %v322
      %341 = vmatpush.msra.mxu0 %v321
      %342 = vmatpush.msra.mxu0 %v320
      %343 = vmatpush.msra.mxu0 %v319
      %344 = vmatpush.msra.mxu0 %v318
      %345 = vmatpush.msra.mxu0 %v317
      %346 = vmatmul.f32.gmra.mxu0 %v328
      %v347 = vpop.f32.mrf.mxu0
      %v348 = vadd.f32 %v325, %v347
      %349 = vdwg.mxu0
      %v350 = vmax.f32 %v348, 0.0
      %v351 = vld [vmem:[%s2] sm:$0xff]
      %v352 = vld [vmem:[%s2 + $0x8] sm:$0xff]
      %v353 = vld [vmem:[%s2 + $0x10] sm:$0xff]
      %v354 = vld [vmem:[%s2 + $0x18] sm:$0xff]
      %v356 = vsel %vm253, %v350, 0
      %358 = vmatpush.msra.mxu0 0.0
      %359 = vmatpush.msra.mxu0 0.0
      %360 = vmatpush.msra.mxu0 0.0
      %361 = vmatpush.msra.mxu0 0.0
      %362 = vmatpush.msra.mxu0 0.0
      %363 = vmatpush.msra.mxu0 0.0
      %364 = vmatpush.msra.mxu0 0.0
      %365 = vmatpush.msra.mxu0 0.0
      %366 = vmatpush.msra.mxu0 0.0
      %367 = vmatpush.msra.mxu0 0.0
      %368 = vmatpush.msra.mxu0 0.0
      %369 = vmatpush.msra.mxu0 0.0
      %370 = vmatpush.msra.mxu0 %v354
      %371 = vmatpush.msra.mxu0 %v353
      %372 = vmatpush.msra.mxu0 %v352
      %373 = vmatpush.msra.mxu0 %v351
      %374 = vmatmul.f32.gmra.mxu0 %v356
      %v375 = vpop.f32.mrf.mxu0
      %v376 = vadd.f32 0.0, %v375
      %377 = vdwg.mxu0
      %v378 = vperm.slane %v249, 0
      %v379 = vmul.f32 %v269, %v378
      %v380 = vsel %vm253, %v379, 0.0
      %381 = vadd.xlane.f32.xlu0 %v380
      %v382 = vpop.xlane.xlu0 %381
      %v383 = vperm.slane %v249, 1
      %v384 = vmul.f32 %v287, %v383
      %v385 = vsel %vm253, %v384, 0.0
      %386 = vadd.xlane.f32.xlu0 %v385
      %v387 = vpop.xlane.xlu0 %386
      %v388 = vadd.f32 %v382, %v376
      %v389 = vperm.slane %v250, 2
      %v390 = vadd.f32 %v388, %v389
      %vm391 = vcmask 7168
      %392 = vst.msk [vmem:[%s246] sm:$0xff] %vm391, %v390
      %v393 = vadd.f32 %v387, %v376
      %v394 = vadd.f32 %v393, %v389
      %vm395 = vcmask 15368
      %396 = vst.msk [vmem:[%s246] sm:$0xff] %vm395, %v394
      %p397 = scmp.lt.s32.totalorder %s17, 1
      %s398 = scalar_select %p397, %s17, 1
      %s399 = smul.addr %s398, 8
      %s400 = scalar_lea.vmem %s6, %s399
      // Predicated region
      $region45: #{tpu_custom_call.1} parent=43 // pred_check
        %p401 = pneg %p166
      $region46: #{tpu_custom_call.1} parent=43 // pred_check_branch
        %403 = sbr.rel (%p401) target = $region48
      $region47: #{tpu_custom_call.1} parent=43 // pred_region
        _
      $region48: #{tpu_custom_call.1} parent=43 // pred_fallthru
        _
    $region44: #{tpu_custom_call.1} parent=5 // pred_fallthru
      _
    %p404 = scmp.le.s32.totalorder 2, %s12
    // Predicated region
    $region49: #{tpu_custom_call.1} parent=5 // pred_check
      %p405 = pneg %p404
    $region50: #{tpu_custom_call.1} parent=5 // pred_check_branch
      %407 = sbr.rel (%p405) target = $region52
    $region51: #{tpu_custom_call.1} parent=5 // pred_region
      %s408 = ssub.s32 %s12, 2
      // Predicated region
      $region53: #{tpu_custom_call.1} parent=51 // pred_check
        %p409 = pneg %p172
      $region54: #{tpu_custom_call.1} parent=51 // pred_check_branch
        %411 = sbr.rel (%p409) target = $region56
      $region55: #{tpu_custom_call.1} parent=51 // pred_region
        %p412 = scmp.lt.s32.totalorder %s18, 1
        %s413 = scalar_select %p412, %s18, 1
        %s414 = smul.addr %s413, 8
        %s415 = scalar_lea.vmem %s6, %s414
      $region56: #{tpu_custom_call.1} parent=51 // pred_fallthru
        _
    $region52: #{tpu_custom_call.1} parent=5 // pred_fallthru
      _
  $region6: #{tpu_custom_call.1} parent=0 // loop_footer
    %s16 = sadd.s32 1, %s12
  $region7: #{tpu_custom_call.1} parent=0 // loop_footer_branch
    %11 = sbr.rel target = $region3
  $region8: #{tpu_custom_call.1} parent=0 // loop_exit
    _

</llo_original>
